<compile_context>
chip_gen: v5e
topology: v5e:2x2
jax: 0.10.0
libtpu: 0.0.40
codegen_flags: <defaults>
</compile_context>

<pallas_src>
import functools

import jax
import jax.numpy as jnp
from jax import lax
from jax.experimental import pallas as pl
from jax.experimental.pallas import tpu as pltpu

TAILLE_ETAT = 8     # LunarLander-v2 observation size
TAILLE_ACTION = 4   # LunarLander-v2 action size
HIDDEN = 64
LANES = 128         # TPU lane width; everything is padded to this
_BIAS_ROWS = 16     # bias block height (16-row aligned load for the bf16 path)
_MIN_TB = 16        # minimum batch-tile quantum (bf16 sublane packing; >= 8 for f32)


def _round_up(n, m):
    return -(-n // m) * m


def _slab_layout(taille_etat):
    """Row offsets of the packed weight slab (all matrices padded to LANES cols).

    All offsets are multiples of 32 so bf16/int8 sub-views stay tile-aligned.
      rows [o_w1, o_w1+S)      : W1  (S x LANES)      cols [0, H) used
      rows [o_w2, o_w2+LANES)  : W2  (LANES x LANES)  top-left (H x H) used
      rows [o_w3, o_w3+LANES)  : W3  (LANES x LANES)  top-left (H x A) used
      rows [o_b , o_b+16)      : row 0 = b1, row 1 = b2, row 2 = b3 (zero-padded)
    """
    r1 = _round_up(taille_etat, 32)
    o_w1 = 0
    o_w2 = r1
    o_w3 = r1 + LANES
    o_b = r1 + 2 * LANES
    total_rows = o_b + 32
    return o_w1, o_w2, o_w3, o_b, total_rows


def _mlp_q_values(x_ref, w_ref, taille_etat):
    """Shared kernel body: returns f32 (tile_batch, LANES) Q-values."""
    o_w1, o_w2, o_w3, o_b, _ = _slab_layout(taille_etat)

    # Single packed slab -> 32-row-aligned (zero-cost) sub-views for each layer.
    w1 = w_ref[o_w1:o_w1 + taille_etat, :]            # (S, 128)
    w2 = w_ref[o_w2:o_w2 + LANES, :]                  # (128, 128)
    w3 = w_ref[o_w3:o_w3 + LANES, :]                  # (128, 128)
    bias = w_ref[o_b:o_b + _BIAS_ROWS, :].astype(jnp.float32)   # (16, 128)
    b1 = bias[0:1, :]
    b2 = bias[1:2, :]
    b3 = bias[2:3, :]
    # NOTE: with a bf16 slab the biases are rounded to bf16 at pack time even
    # though the add is f32 (double rounding). Harmless for DQN Q-values.

    # In-kernel cast of x to the slab dtype (free VPU filler under DMA/MXU slack;
    # saves a standalone XLA convert + HBM round-trip in the wrapper).
    x = x_ref[...].astype(w1.dtype)                   # (TB, S)

    # 3 MXU matmuls with f32 accumulation; bias-add + ReLU kept in f32 (v5e VPU).
    h = jnp.dot(x, w1, preferred_element_type=jnp.float32) + b1
    h = jnp.maximum(h, 0.0).astype(w1.dtype)
    h = jnp.dot(h, w2, preferred_element_type=jnp.float32) + b2
    h = jnp.maximum(h, 0.0).astype(w2.dtype)
    return jnp.dot(h, w3, preferred_element_type=jnp.float32) + b3


def _make_mlp_kernel(taille_etat):
    def kernel(x_ref, w_ref, o_ref):
        # Lane-dense (TB, 128) store; wrapper slices the real action columns.
        o_ref[...] = _mlp_q_values(x_ref, w_ref, taille_etat).astype(o_ref.dtype)
    return kernel


def _make_act_kernel(taille_etat, taille_action):
    def kernel(x_ref, w_ref, a_ref):
        q = _mlp_q_values(x_ref, w_ref, taille_etat)            # (B, 128) f32
        col = lax.broadcasted_iota(jnp.int32, q.shape, 1)
        q = jnp.where(col < taille_action, q, -jnp.inf)         # mask padded lanes
        m = jnp.max(q, axis=-1, keepdims=True)
        idx = jnp.where(q == m, col, LANES)                     # first-max tie-break
        a_ref[...] = jnp.min(idx, axis=-1, keepdims=True)       # (B, 1) int32
    return kernel


def pack_params(params, dtype=jnp.float32):
    """Pack (w1, b1, w2, b2, w3, b3) -- weights already (in, out) -- into one slab."""
    w1, b1, w2, b2, w3, b3 = params
    s, h = w1.shape
    h2, a = w3.shape
    assert h == h2 <= LANES and a <= LANES
    o_w1, o_w2, o_w3, o_b, rows = _slab_layout(s)

    slab = jnp.zeros((rows, LANES), jnp.float32)
    slab = slab.at[o_w1:o_w1 + s, 0:h].set(w1)
    slab = slab.at[o_w2:o_w2 + h, 0:h].set(w2)
    slab = slab.at[o_w3:o_w3 + h, 0:a].set(w3)
    slab = slab.at[o_b + 0, 0:h].set(b1.reshape(-1))
    slab = slab.at[o_b + 1, 0:h].set(b2.reshape(-1))
    slab = slab.at[o_b + 2, 0:a].set(b3.reshape(-1))
    return slab.astype(dtype)


@functools.partial(jax.jit,
                   static_argnames=("taille_action", "block_batch", "out_dtype"))
def reseau_neuronal_forward(x, packed_w, *, taille_action=TAILLE_ACTION,
                            block_batch=1024, out_dtype=jnp.float32):
    """x: (batch, taille_etat). Returns (batch, taille_action) of `out_dtype`."""
    batch, taille_etat = x.shape
    assert packed_w.shape == (_slab_layout(taille_etat)[4], LANES)

    # Batch tiling: big tiles amortize the ~0.35 us/step grid overhead; when the
    # batch is large enough, force >= 2 grid steps so the "parallel" axis shards
    # across v7x's two TensorCores. Tiny (act-time) batches run as one full block.
    if batch <= 2 * _MIN_TB:
        tb = batch
    else:
        tb = min(block_batch, _round_up(pl.cdiv(batch, 2), _MIN_TB))
    grid = pl.cdiv(batch, tb)   # ragged last block handled by Pallas (OOB writes dropped)

    kernel = _make_mlp_kernel(taille_etat)
    out = pl.pallas_call(
        kernel,
        out_shape=jax.ShapeDtypeStruct((batch, LANES), out_dtype),
        grid_spec=pltpu.PrefetchScalarGridSpec(
            num_scalar_prefetch=0,
            grid=(grid,),
            in_specs=[
                pl.BlockSpec((tb, taille_etat), lambda i: (i, 0)),
                # Constant block index -> the slab is DMA'd once and stays
                # VMEM-resident; only activations stream in the steady state.
                # (pipeline_mode=pl.Buffered(1) would also drop the unused 2nd
                #  slab buffer, ~80-160 KB; omitted for broad jax compatibility.)
                pl.BlockSpec(packed_w.shape, lambda i: (0, 0)),
            ],
            out_specs=pl.BlockSpec((tb, LANES), lambda i: (i, 0)),
        ),
        compiler_params=pltpu.CompilerParams(
            dimension_semantics=("parallel",)),
    )(x, packed_w)

    return out[:, :taille_action]


@functools.partial(jax.jit, static_argnames=("taille_action",))
def reseau_neuronal_act(x, packed_w, *, taille_action=TAILLE_ACTION):
    """Greedy action: argmax over Q fused into the kernel.

    Intended for the small-batch per-env-step act path (batch <= ~32); runs as a
    single block and returns (batch,) int32, so no lane-padded Q slab is sliced
    or copied on the host side.
    """
    batch, taille_etat = x.shape
    assert packed_w.shape == (_slab_layout(taille_etat)[4], LANES)

    kernel = _make_act_kernel(taille_etat, taille_action)
    act = pl.pallas_call(
        kernel,
        out_shape=jax.ShapeDtypeStruct((batch, 1), jnp.int32),
        grid_spec=pltpu.PrefetchScalarGridSpec(
            num_scalar_prefetch=0,
            grid=(1,),
            in_specs=[
                pl.BlockSpec((batch, taille_etat), lambda i: (0, 0)),
                pl.BlockSpec(packed_w.shape, lambda i: (0, 0)),
            ],
            out_specs=pl.BlockSpec((batch, 1), lambda i: (0, 0)),
        ),
    )(x, packed_w)
    return act[:, 0]


def init_params(key, taille_etat=TAILLE_ETAT, taille_action=TAILLE_ACTION,
                hidden=HIDDEN):
    """PyTorch nn.Linear-style init (uniform +/- 1/sqrt(fan_in)).
    Weights returned already transposed to (in, out)."""
    keys = jax.random.split(key, 6)

    def linear(kw, kb, fan_in, fan_out):
        bound = 1.0 / jnp.sqrt(jnp.float32(fan_in))
        w = jax.random.uniform(kw, (fan_in, fan_out), jnp.float32, -bound, bound)
        b = jax.random.uniform(kb, (1, fan_out), jnp.float32, -bound, bound)
        return w, b

    w1, b1 = linear(keys[0], keys[1], taille_etat, hidden)
    w2, b2 = linear(keys[2], keys[3], hidden, hidden)
    w3, b3 = linear(keys[4], keys[5], hidden, taille_action)
    return (w1, b1, w2, b2, w3, b3)


def _reference_forward(x, params):
    w1, b1, w2, b2, w3, b3 = params
    h1 = jnp.maximum(x @ w1 + b1, 0.0)
    h2 = jnp.maximum(h1 @ w2 + b2, 0.0)
    return h2 @ w3 + b3


if __name__ == "__main__":
    key = jax.random.PRNGKey(0)
    k_params, k_x = jax.random.split(key)
    params = init_params(k_params)
    slab_f32 = pack_params(params, jnp.float32)

    # --- small act-time batch: single full-shape block, f32 slab ---
    batch = 8
    x = jax.random.normal(k_x, (batch, TAILLE_ETAT), jnp.float32)
    out = jax.block_until_ready(reseau_neuronal_forward(x, slab_f32))
    ref = _reference_forward(x, params)
    assert out.shape == (batch, TAILLE_ACTION)
    assert jnp.allclose(out, ref, atol=1e-5, rtol=1e-5)

    # --- fused-argmax act path ---
    act = jax.block_until_ready(reseau_neuronal_act(x, slab_f32))
    assert act.shape == (batch,)
    assert jnp.array_equal(act, jnp.argmax(ref, axis=-1).astype(jnp.int32))

    # --- medium batch: 2-step grid + ragged last block (no wrapper pad) ---
    batch2 = 200
    x2 = jax.random.normal(jax.random.PRNGKey(1), (batch2, TAILLE_ETAT), jnp.float32)
    out2 = jax.block_until_ready(reseau_neuronal_forward(x2, slab_f32))
    ref2 = _reference_forward(x2, params)
    assert out2.shape == (batch2, TAILLE_ACTION)
    assert jnp.allclose(out2, ref2, atol=1e-5, rtol=1e-5)

    # --- bf16 slab (MXU-native inputs, f32 accumulation) + bf16 output ---
    slab_bf16 = pack_params(params, jnp.bfloat16)
    out_bf = jax.block_until_ready(
        reseau_neuronal_forward(x2, slab_bf16, out_dtype=jnp.bfloat16))
    assert out_bf.shape == (batch2, TAILLE_ACTION) and out_bf.dtype == jnp.bfloat16
    assert jnp.allclose(out_bf.astype(jnp.float32), ref2, atol=1e-1, rtol=1e-1)

    # --- larger "replay/training" batch: default block_batch path, 2 x 512 tiles ---
    batch3 = 1024
    x3 = jax.random.normal(jax.random.PRNGKey(2), (batch3, TAILLE_ETAT), jnp.float32)
    out3 = jax.block_until_ready(reseau_neuronal_forward(x3, slab_f32))
    ref3 = _reference_forward(x3, params)
    assert out3.shape == (batch3, TAILLE_ACTION)
    assert jnp.allclose(out3, ref3, atol=1e-5, rtol=1e-5)

    print("KERNEL_OK")
</pallas_src>

<mosaic_0001>
module attributes {stable_mosaic.version = 11 : i64} {
  func.func @kernel(%arg0: i32, %arg1: memref<8x8xf32, #tpu.memory_space<vmem>>, %arg2: memref<320x128xf32, #tpu.memory_space<vmem>>, %arg3: memref<8x128xf32, #tpu.memory_space<vmem>>) attributes {dimension_semantics = [#tpu.dimension_semantics<parallel>], iteration_bounds = array<i64: 1>, scalar_prefetch = 0 : i64, scratch_operands = 0 : i64, tpu.core_type = #tpu.core_type<tc>, window_params = [{transform_indices = @transform_0, window_bounds = array<i64: 8, 8>}, {pipeline_mode = #tpu.pipeline_mode<synchronous>, transform_indices = @transform_1, window_bounds = array<i64: 320, 128>}, {transform_indices = @transform_2, window_bounds = array<i64: 8, 128>}]} {
    %c0 = arith.constant 0 : index
    %c0_0 = arith.constant 0 : index
    %0 = vector.load %arg2[%c0, %c0_0] : memref<320x128xf32, #tpu.memory_space<vmem>>, vector<8x128xf32>
    %c32 = arith.constant 32 : index
    %c0_1 = arith.constant 0 : index
    %1 = vector.load %arg2[%c32, %c0_1] : memref<320x128xf32, #tpu.memory_space<vmem>>, vector<128x128xf32>
    %c160 = arith.constant 160 : index
    %c0_2 = arith.constant 0 : index
    %2 = vector.load %arg2[%c160, %c0_2] : memref<320x128xf32, #tpu.memory_space<vmem>>, vector<128x128xf32>
    %c288 = arith.constant 288 : index
    %c0_3 = arith.constant 0 : index
    %3 = vector.load %arg2[%c288, %c0_3] : memref<320x128xf32, #tpu.memory_space<vmem>>, vector<16x128xf32>
    %4 = vector.extract_strided_slice %3 {offsets = [0, 0], sizes = [1, 128], strides = [1, 1]} : vector<16x128xf32> to vector<1x128xf32>
    %5 = vector.extract_strided_slice %3 {offsets = [1, 0], sizes = [1, 128], strides = [1, 1]} : vector<16x128xf32> to vector<1x128xf32>
    %6 = vector.extract_strided_slice %3 {offsets = [2, 0], sizes = [1, 128], strides = [1, 1]} : vector<16x128xf32> to vector<1x128xf32>
    %c0_4 = arith.constant 0 : index
    %c0_5 = arith.constant 0 : index
    %7 = vector.load %arg1[%c0_4, %c0_5] : memref<8x8xf32, #tpu.memory_space<vmem>>, vector<8x8xf32>
    %cst = arith.constant dense<0.000000e+00> : vector<8x128xf32>
    %8 = tpu.matmul %7, %0, %cst {dimension_numbers = #tpu.dot_dimension_numbers<[1], [0], [0], [1], [0, 0, 1, 1], [], []>} : vector<8x8xf32>, vector<8x128xf32>, vector<8x128xf32> -> vector<8x128xf32>
    %9 = vector.broadcast %4 : vector<1x128xf32> to vector<8x128xf32>
    %10 = arith.addf %8, %9 : vector<8x128xf32>
    %cst_6 = arith.constant 0.000000e+00 : f32
    %11 = vector.broadcast %cst_6 : f32 to vector<8x128xf32>
    %12 = arith.maximumf %10, %11 : vector<8x128xf32>
    %cst_7 = arith.constant dense<0.000000e+00> : vector<8x128xf32>
    %13 = tpu.matmul %12, %1, %cst_7 {dimension_numbers = #tpu.dot_dimension_numbers<[1], [0], [0], [1], [0, 0, 1, 1], [], []>} : vector<8x128xf32>, vector<128x128xf32>, vector<8x128xf32> -> vector<8x128xf32>
    %14 = vector.broadcast %5 : vector<1x128xf32> to vector<8x128xf32>
    %15 = arith.addf %13, %14 : vector<8x128xf32>
    %cst_8 = arith.constant 0.000000e+00 : f32
    %16 = vector.broadcast %cst_8 : f32 to vector<8x128xf32>
    %17 = arith.maximumf %15, %16 : vector<8x128xf32>
    %cst_9 = arith.constant dense<0.000000e+00> : vector<8x128xf32>
    %18 = tpu.matmul %17, %2, %cst_9 {dimension_numbers = #tpu.dot_dimension_numbers<[1], [0], [0], [1], [0, 0, 1, 1], [], []>} : vector<8x128xf32>, vector<128x128xf32>, vector<8x128xf32> -> vector<8x128xf32>
    %19 = vector.broadcast %6 : vector<1x128xf32> to vector<8x128xf32>
    %20 = arith.addf %18, %19 : vector<8x128xf32>
    %c0_10 = arith.constant 0 : index
    %c0_11 = arith.constant 0 : index
    %21 = vector.load %arg3[%c0_10, %c0_11] : memref<8x128xf32, #tpu.memory_space<vmem>>, vector<8x128xf32>
    tpu.vector_store %arg3[%c0_10, %c0_11], %20 {strides = array<i32>} : memref<8x128xf32, #tpu.memory_space<vmem>>, vector<8x128xf32>,
    return
  }
  func.func @transform_0(%arg0: i32) -> (i32, i32) {
    %c0_i32 = arith.constant 0 : i32
    %c0_i32_0 = arith.constant 0 : i32
    return %arg0, %c0_i32 : i32, i32
  }
  func.func @transform_1(%arg0: i32) -> (i32, i32) {
    %c0_i32 = arith.constant 0 : i32
    %c0_i32_0 = arith.constant 0 : i32
    %c0_i32_1 = arith.constant 0 : i32
    return %c0_i32, %c0_i32_0 : i32, i32
  }
  func.func @transform_2(%arg0: i32) -> (i32, i32) {
    %c0_i32 = arith.constant 0 : i32
    %c0_i32_0 = arith.constant 0 : i32
    return %arg0, %c0_i32 : i32, i32
  }
}

</mosaic_0001>

<llo_original>
// kernel: reseau_neuronal_forward.1
$region0: #{reseau_neuronal_forward.1}
  #allocation0 [shape = 'u32[]', space=smem, size = 0x4, offset = 0x4, fixed_abs, tag = 'smem constant byte address 0x4 - core index']
  #allocation1 [shape = 'u32[72,128]{1,0:T(1,128)}', space=vmem, size = 0x9000, scoped, tag = 'internal scratch']
  %s0 = inlined_call_operand.hbm [shape: f32[8,8], index: 0, kind: input, shape index: {}]
  %s1 = inlined_call_operand.hbm [shape: f32[320,128], index: 1, kind: input, shape index: {}]
  %s2 = inlined_call_operand.vmem [shape: f32[8,128], index: 2, kind: output, shape index: {}]
  %s3 = sld [smem:[#allocation0]]
  $region26: #{reseau_neuronal_forward.1} parent=0
    _
  %s5 = ssub.s32 1, %s3
  %s6 = scalar_select 0, %s5, %s3
  $region1: #{reseau_neuronal_forward.1} parent=0
    #allocation2 [shape = 'u8[4096]{0}', space=vmem, size = 0x1000, scoped, tag = 'input window, operand 0, single buffered']
    #allocation3 [shape = 's32[1]{0}', space=sflag, size = 0x4, scoped, tag = 'scoped memory for reseau_neuronal_forward.1']
    #allocation4 [shape = 'u8[163840]{0}', space=vmem, size = 0x28000, scoped, tag = 'input window, operand 1, single buffered']
    #allocation5 [shape = 's32[1]{0}', space=sflag, size = 0x4, scoped, tag = 'scoped memory for reseau_neuronal_forward.1']
    %7 = vsyncpa [#allocation3], 0
    %8 = vsyncpa [#allocation5], 0
    // Predicated region
    $region2: #{reseau_neuronal_forward.1} parent=1 // pred_check
      _
    $region3: #{reseau_neuronal_forward.1} parent=1 // pred_check_branch
      %10 = sbr.rel (0) target = $region5
    $region4: #{reseau_neuronal_forward.1} parent=1 // pred_region
      %12 = vsyncadd [#allocation3], 0
      %s14 = sshll.u32 %s0, 4
      %s15 = int_to_ptr.hbm [resolvable:$true] %s14
      %s16 = sshll.u32 [#allocation2], 4
      %s17 = int_to_ptr.vmem [resolvable:$true] %s16
      %19 = dma.hbm_to_vmem [thread:$0]  %s15, 128, %s17, [#allocation3]
    $region5: #{reseau_neuronal_forward.1} parent=1 // pred_fallthru
      _
    // Predicated region
    $region6: #{reseau_neuronal_forward.1} parent=1 // pred_check
      _
    $region7: #{reseau_neuronal_forward.1} parent=1 // pred_check_branch
      %21 = sbr.rel (0) target = $region9
    $region8: #{reseau_neuronal_forward.1} parent=1 // pred_region
      %23 = vsyncadd [#allocation5], 0
      %s24 = sshll.u32 %s1, 4
      %s25 = int_to_ptr.hbm [resolvable:$true] %s24
      %s26 = sshll.u32 [#allocation4], 4
      %s27 = int_to_ptr.vmem [resolvable:$true] %s26
      %32 = dma.hbm_to_vmem [thread:$0]  %s25, 5120, %s27, [#allocation5], 128, 128, 8
    $region9: #{reseau_neuronal_forward.1} parent=1 // pred_fallthru
      _
    // Predicated region
    $region10: #{reseau_neuronal_forward.1} parent=1 // pred_check
      _
    $region11: #{reseau_neuronal_forward.1} parent=1 // pred_check_branch
      %34 = sbr.rel (0) target = $region13
    $region12: #{reseau_neuronal_forward.1} parent=1 // pred_region
      %36 = dma.done [#allocation3], 128
    $region13: #{reseau_neuronal_forward.1} parent=1 // pred_fallthru
      _
    // Predicated region
    $region14: #{reseau_neuronal_forward.1} parent=1 // pred_check
      _
    $region15: #{reseau_neuronal_forward.1} parent=1 // pred_check_branch
      %38 = sbr.rel (0) target = $region17
    $region16: #{reseau_neuronal_forward.1} parent=1 // pred_region
      %40 = dma.done [#allocation5], 5120
    $region17: #{reseau_neuronal_forward.1} parent=1 // pred_fallthru
      _
    %v41 = vld [vmem:[#allocation4] sm:$0xff]
    %v42 = vld [vmem:[#allocation4 + $0x20] sm:$0xff]
    %v43 = vld [vmem:[#allocation4 + $0x28] sm:$0xff]
    %v44 = vld [vmem:[#allocation4 + $0x30] sm:$0xff]
    %v45 = vld [vmem:[#allocation4 + $0x38] sm:$0xff]
    %v46 = vld [vmem:[#allocation4 + $0x40] sm:$0xff]
    %v47 = vld [vmem:[#allocation4 + $0x48] sm:$0xff]
    %v48 = vld [vmem:[#allocation4 + $0x50] sm:$0xff]
    %v49 = vld [vmem:[#allocation4 + $0x58] sm:$0xff]
    %v50 = vld [vmem:[#allocation4 + $0x60] sm:$0xff]
    %v51 = vld [vmem:[#allocation4 + $0x68] sm:$0xff]
    %v52 = vld [vmem:[#allocation4 + $0x70] sm:$0xff]
    %v53 = vld [vmem:[#allocation4 + $0x78] sm:$0xff]
    %v54 = vld [vmem:[#allocation4 + $0x80] sm:$0xff]
    %v55 = vld [vmem:[#allocation4 + $0x88] sm:$0xff]
    %v56 = vld [vmem:[#allocation4 + $0x90] sm:$0xff]
    %v57 = vld [vmem:[#allocation4 + $0x98] sm:$0xff]
    %v58 = vld [vmem:[#allocation4 + $0xa0] sm:$0xff]
    %v59 = vld [vmem:[#allocation4 + $0xa8] sm:$0xff]
    %v60 = vld [vmem:[#allocation4 + $0xb0] sm:$0xff]
    %v61 = vld [vmem:[#allocation4 + $0xb8] sm:$0xff]
    %v62 = vld [vmem:[#allocation4 + $0xc0] sm:$0xff]
    %v63 = vld [vmem:[#allocation4 + $0xc8] sm:$0xff]
    %v64 = vld [vmem:[#allocation4 + $0xd0] sm:$0xff]
    %v65 = vld [vmem:[#allocation4 + $0xd8] sm:$0xff]
    %v66 = vld [vmem:[#allocation4 + $0xe0] sm:$0xff]
    %v67 = vld [vmem:[#allocation4 + $0xe8] sm:$0xff]
    %v68 = vld [vmem:[#allocation4 + $0xf0] sm:$0xff]
    %v69 = vld [vmem:[#allocation4 + $0xf8] sm:$0xff]
    %v70 = vld [vmem:[#allocation4 + $0x100] sm:$0xff]
    %v71 = vld [vmem:[#allocation4 + $0x108] sm:$0xff]
    %v72 = vld [vmem:[#allocation4 + $0x110] sm:$0xff]
    %v73 = vld [vmem:[#allocation4 + $0x118] sm:$0xff]
    %v74 = vld [vmem:[#allocation4 + $0x120] sm:$0xff]
    %v75 = vld [vmem:[#allocation2] sm:$0xff]
    %v76 = vperm.slane %v74, 0
    %vm77 = vcmask 64512
    %v79 = vsel %vm77, %v75, 0
    %81 = vmatpush.msra.mxu0 0.0
    %82 = vmatpush.msra.mxu0 0.0
    %83 = vmatpush.msra.mxu0 0.0
    %84 = vmatpush.msra.mxu0 0.0
    %85 = vmatpush.msra.mxu0 0.0
    %86 = vmatpush.msra.mxu0 0.0
    %87 = vmatpush.msra.mxu0 0.0
    %88 = vmatpush.msra.mxu0 0.0
    %89 = vmatpush.msra.mxu0 0.0
    %90 = vmatpush.msra.mxu0 0.0
    %91 = vmatpush.msra.mxu0 0.0
    %92 = vmatpush.msra.mxu0 0.0
    %93 = vmatpush.msra.mxu0 0.0
    %94 = vmatpush.msra.mxu0 0.0
    %95 = vmatpush.msra.mxu0 0.0
    %96 = vmatpush.msra.mxu0 %v41
    %97 = vmatmul.f32.gmra.mxu0 %v79
    %v98 = vpop.f32.mrf.mxu0
    %v99 = vadd.f32 %v76, %v98
    %100 = vdwg.mxu0
    %v101 = vmax.f32 %v99, 0.0
    %v102 = vperm.slane %v74, 1
    %103 = vmatpush.msra.mxu0 %v57
    %104 = vmatpush.msra.mxu0 %v56
    %105 = vmatpush.msra.mxu0 %v55
    %106 = vmatpush.msra.mxu0 %v54
    %107 = vmatpush.msra.mxu0 %v53
    %108 = vmatpush.msra.mxu0 %v52
    %109 = vmatpush.msra.mxu0 %v51
    %110 = vmatpush.msra.mxu0 %v50
    %111 = vmatpush.msra.mxu0 %v49
    %112 = vmatpush.msra.mxu0 %v48
    %113 = vmatpush.msra.mxu0 %v47
    %114 = vmatpush.msra.mxu0 %v46
    %115 = vmatpush.msra.mxu0 %v45
    %116 = vmatpush.msra.mxu0 %v44
    %117 = vmatpush.msra.mxu0 %v43
    %118 = vmatpush.msra.mxu0 %v42
    %119 = vmatmul.f32.gmra.mxu0 %v101
    %v120 = vpop.f32.mrf.mxu0
    %v121 = vadd.f32 %v102, %v120
    %122 = vdwg.mxu0
    %v123 = vmax.f32 %v121, 0.0
    %v124 = vperm.slane %v74, 2
    %125 = vmatpush.msra.mxu0 %v73
    %126 = vmatpush.msra.mxu0 %v72
    %127 = vmatpush.msra.mxu0 %v71
    %128 = vmatpush.msra.mxu0 %v70
    %129 = vmatpush.msra.mxu0 %v69
    %130 = vmatpush.msra.mxu0 %v68
    %131 = vmatpush.msra.mxu0 %v67
    %132 = vmatpush.msra.mxu0 %v66
    %133 = vmatpush.msra.mxu0 %v65
    %134 = vmatpush.msra.mxu0 %v64
    %135 = vmatpush.msra.mxu0 %v63
    %136 = vmatpush.msra.mxu0 %v62
    %137 = vmatpush.msra.mxu0 %v61
    %138 = vmatpush.msra.mxu0 %v60
    %139 = vmatpush.msra.mxu0 %v59
    %140 = vmatpush.msra.mxu0 %v58
    %141 = vmatmul.f32.gmra.mxu0 %v123
    %v142 = vpop.f32.mrf.mxu0
    %v143 = vadd.f32 %v124, %v142
    %144 = vdwg.mxu0
    %145 = vst [vmem:[%s2] sm:$0xff] %v143
    // Predicated region
    $region18: #{reseau_neuronal_forward.1} parent=1 // pred_check
      _
    $region19: #{reseau_neuronal_forward.1} parent=1 // pred_check_branch
      %147 = sbr.rel (0) target = $region21
    $region20: #{reseau_neuronal_forward.1} parent=1 // pred_region
      _
    $region21: #{reseau_neuronal_forward.1} parent=1 // pred_fallthru
      _
    // Predicated region
    $region22: #{reseau_neuronal_forward.1} parent=1 // pred_check
      _
    $region23: #{reseau_neuronal_forward.1} parent=1 // pred_check_branch
      %149 = sbr.rel (0) target = $region25
    $region24: #{reseau_neuronal_forward.1} parent=1 // pred_region
      _
    $region25: #{reseau_neuronal_forward.1} parent=1 // pred_fallthru
      _
    %150 = vsyncpa [#allocation3], 1
    %151 = vsyncpa [#allocation5], 1

</llo_original>
